<compile_context>
chip_gen: v7x
topology: tpu7x:2x2x1
jax: 0.10.0
libtpu: 0.0.40
codegen_flags: <defaults>
</compile_context>

<pallas_src>
import functools

import jax
import jax.numpy as jnp
from jax.experimental import pallas as pl
from jax.experimental.pallas import tpu as pltpu


def _detect_tpu():
    """Best-effort (vmem_budget_bytes, n_tensorcores_per_device)."""
    vmem_physical = 128 << 20
    n_cores = 1
    try:
        info = pltpu.get_tpu_info()
        vmem_physical = int(getattr(info, "vmem_capacity_bytes", vmem_physical))
    except Exception:
        pass
    try:
        dev = jax.devices()[0]
        kind = str(getattr(dev, "device_kind", "")).lower()
        if "v7" in kind:
            n_cores = 2
        n_cores = max(n_cores, int(getattr(dev, "num_cores", 1) or 1))
    except Exception:
        pass
    # 64 MiB per-TC VMEM is the v7x signature (2 TCs/chip).
    if vmem_physical <= (64 << 20):
        n_cores = max(n_cores, 2)
    # Raise scoped VMEM explicitly (v5e default is only 16 MiB); keep headroom
    # below physical (v7x has 64 MiB total per TC).
    vmem_budget = min(64 << 20, max(32 << 20, vmem_physical - (16 << 20)))
    return vmem_budget, n_cores


def _charbonnier_sum_kernel(x_ref, y_ref, acc_ref, *, eps2, chunk_rows,
                            n_inner, valid_tiles, guard):
    """Grid = (outer, inner). acc_ref is the resident (8,128) partial-sum block
    for the current outer index; re-initialized whenever the inner axis wraps."""

    @pl.when(pl.program_id(1) == 0)
    def _():
        acc_ref[...] = jnp.zeros_like(acc_ref)

    def _accumulate():
        e2 = jnp.float32(eps2)
        n_chunks = x_ref.shape[0] // chunk_rows

        def body(c, carry):
            r0 = pl.multiple_of(c * chunk_rows, chunk_rows)
            # Load native dtype, upcast in VMEM (halves HBM traffic for bf16).
            d = (x_ref[pl.ds(r0, chunk_rows), :].astype(jnp.float32)
                 - y_ref[pl.ds(r0, chunk_rows), :].astype(jnp.float32))
            v = jnp.sqrt(d * d + e2)
            # (chunk_rows,128) -> (8,128) via layout-preserving reshape + VPU adds.
            acc_ref[...] += jnp.sum(v.reshape(-1, 8, 128), axis=0)
            return carry

        jax.lax.fori_loop(0, n_chunks, body, 0)

    if guard:
        # Overhanging step on the last core of an odd tile count: index_map is
        # clamped (harmless re-read of the last block) and accumulation skipped.
        pl.when(pl.program_id(0) * n_inner + pl.program_id(1)
                < valid_tiles)(_accumulate)
    else:
        _accumulate()


def charbonnier_loss(preds, targets, epsilon=0.001):
    assert preds.shape == targets.shape, "preds/targets must have same shape"
    n = preds.size
    cols = 128
    eps2 = float(epsilon) ** 2

    x = preds.reshape(-1)
    y = targets.reshape(-1)

    isz_x = jnp.dtype(preds.dtype).itemsize
    isz_y = jnp.dtype(targets.dtype).itemsize
    # Sublane packing multiple: 8 (f32), 16 (bf16), 32 (int8/fp8).
    sublane_mult = max(8, 32 // max(1, min(isz_x, isz_y)))
    # In-kernel accumulation granule: bounds live ranges (~32 f32 vregs).
    chunk_rows = 256

    vmem_budget, n_cores = _detect_tpu()
    # Size the block so 2 inputs x 2 pipeline buffers use ~half of vmem_budget.
    bytes_per_row = 2 * cols * (isz_x + isz_y)
    block_rows_cfg = (vmem_budget // 2) // bytes_per_row
    block_rows_cfg = max(chunk_rows,
                         min(32768, (block_rows_cfg // chunk_rows) * chunk_rows))

    rows = n // cols                      # full lane-dense rows
    tiles = rows // block_rows_cfg        # full blocks available

    if tiles >= 1:
        block_rows = block_rows_cfg
        # Never drop to a single outer step on 2-TC parts (v7x): odd tile
        # counts are handled by the in-kernel clamp/skip instead.
        n_outer = 2 if (n_cores >= 2 and tiles >= 2) else 1
        n_inner = -(-tiles // n_outer)    # cdiv
        valid_tiles = tiles
    else:
        # Small input: a single block covering all full sublane groups.
        block_rows = (rows // sublane_mult) * sublane_mult
        chunk_rows = max(block_rows, 1)
        n_outer, n_inner = 1, 1
        valid_tiles = 1 if block_rows else 0

    kernel_rows = valid_tiles * block_rows
    kernel_elems = kernel_rows * cols

    total = jnp.float32(0.0)
    if kernel_elems > 0:
        if n % cols == 0:
            # Free reshape; the grid only ever touches the first kernel_rows rows.
            x2 = x.reshape(rows, cols)
            y2 = y.reshape(rows, cols)
        else:
            # Rare ragged-lane case: prefix slice of the bulk (no full-array pad).
            x2 = x[: rows * cols].reshape(rows, cols)
            y2 = y[: rows * cols].reshape(rows, cols)

        guard = (n_outer * n_inner != valid_tiles)
        if guard:
            def in_idx(o, i):
                return (jnp.minimum(o * n_inner + i, valid_tiles - 1), 0)
        else:
            def in_idx(o, i):
                return (o * n_inner + i, 0)

        grid_spec = pltpu.PrefetchScalarGridSpec(
            num_scalar_prefetch=0,
            grid=(n_outer, n_inner),
            in_specs=[
                pl.BlockSpec((block_rows, cols), in_idx),
                pl.BlockSpec((block_rows, cols), in_idx),
            ],
            # One resident (8,128) partial-sum block per outer index.
            out_specs=pl.BlockSpec((8, cols), lambda o, i: (o, 0)),
        )

        kernel = functools.partial(
            _charbonnier_sum_kernel, eps2=eps2, chunk_rows=chunk_rows,
            n_inner=n_inner, valid_tiles=valid_tiles, guard=guard)

        # TODO(synk): verify via xprof that the outer "parallel" axis actually
        # shards across both v7x TensorCores; if not, switch it to CORE_PARALLEL.
        partials = pl.pallas_call(
            kernel,
            out_shape=jax.ShapeDtypeStruct((n_outer * 8, cols), jnp.float32),
            grid_spec=grid_spec,
            compiler_params=pltpu.CompilerParams(
                dimension_semantics=("parallel", "arbitrary"),
                vmem_limit_bytes=int(vmem_budget)),
            cost_estimate=pl.CostEstimate(
                flops=5 * kernel_elems,
                transcendentals=kernel_elems,
                bytes_accessed=kernel_elems * (isz_x + isz_y)
                + n_outer * 8 * cols * 4),
        )(x2, y2)

        # Single tiny final reduce in the wrapper.
        total = jnp.sum(partials, dtype=jnp.float32)

    # Exact tail (< one block of rows, plus any <128-lane remainder): plain jnp.
    tail_elems = n - kernel_elems
    if tail_elems:
        td = (x[kernel_elems:].astype(jnp.float32)
              - y[kernel_elems:].astype(jnp.float32))
        total = total + jnp.sum(jnp.sqrt(td * td + jnp.float32(eps2)))

    return total / jnp.float32(n)


def charbonnier_loss_ref(preds, targets, epsilon=0.001):
    return jnp.mean(jnp.sqrt((preds - targets) ** 2 + epsilon ** 2))


if __name__ == "__main__":
    key = jax.random.PRNGKey(0)
    k1, k2 = jax.random.split(key)

    # NCHW inputs, same convention as the PyTorch module's callers.
    preds = jax.random.normal(k1, (2, 4, 16, 16), dtype=jnp.float32)
    targets = jax.random.normal(k2, (2, 4, 16, 16), dtype=jnp.float32)

    loss = charbonnier_loss(preds, targets, epsilon=0.001)
    loss = jax.block_until_ready(loss)

    ref = charbonnier_loss_ref(preds, targets, epsilon=0.001)
    assert jnp.allclose(loss, ref, rtol=1e-5, atol=1e-6), (loss, ref)

    print("KERNEL_OK")
</pallas_src>

<mosaic_0001>
module attributes {stable_mosaic.version = 11 : i64} {
  func.func @_charbonnier_sum_kernel(%arg0: i32, %arg1: i32, %arg2: memref<16x128xf32, #tpu.memory_space<vmem>>, %arg3: memref<16x128xf32, #tpu.memory_space<vmem>>, %arg4: memref<8x128xf32, #tpu.memory_space<vmem>>) attributes {dimension_semantics = [#tpu.dimension_semantics<parallel>, #tpu.dimension_semantics<arbitrary>], iteration_bounds = array<i64: 1, 1>, scalar_prefetch = 0 : i64, scratch_operands = 0 : i64, tpu.core_type = #tpu.core_type<tc>, window_params = [{transform_indices = @transform_0, window_bounds = array<i64: 16, 128>}, {transform_indices = @transform_1, window_bounds = array<i64: 16, 128>}, {transform_indices = @transform_2, window_bounds = array<i64: 8, 128>}]} {
    %c0_i32 = arith.constant 0 : i32
    %0 = arith.cmpi eq, %arg1, %c0_i32 : i32
    %1 = arith.extui %0 : i1 to i32
    %c0_i32_0 = arith.constant 0 : i32
    %2 = arith.cmpi ne, %1, %c0_i32_0 : i32
    scf.if %2 {
      %cst_8 = arith.constant 0.000000e+00 : f32
      %19 = vector.broadcast %cst_8 : f32 to vector<8x128xf32>
      %c0_9 = arith.constant 0 : index
      %c0_10 = arith.constant 0 : index
      %20 = vector.load %arg4[%c0_9, %c0_10] : memref<8x128xf32, #tpu.memory_space<vmem>>, vector<8x128xf32>
      tpu.vector_store %arg4[%c0_9, %c0_10], %19 {strides = array<i32>} : memref<8x128xf32, #tpu.memory_space<vmem>>, vector<8x128xf32>,
    } else {
    }
    %cst = arith.constant 9.99999997E-7 : f32
    %c0_i32_1 = arith.constant 0 : i32
    %c16_i32 = arith.constant 16 : i32
    %3 = arith.muli %c0_i32_1, %c16_i32 : i32
    %4 = tpu.assume_multiple %3, 16 : i32
    %5 = arith.index_cast %4 : i32 to index
    %c0 = arith.constant 0 : index
    %6 = vector.load %arg2[%5, %c0] : memref<16x128xf32, #tpu.memory_space<vmem>>, vector<16x128xf32>
    %7 = arith.index_cast %4 : i32 to index
    %c0_2 = arith.constant 0 : index
    %8 = vector.load %arg3[%7, %c0_2] : memref<16x128xf32, #tpu.memory_space<vmem>>, vector<16x128xf32>
    %9 = arith.subf %6, %8 : vector<16x128xf32>
    %10 = arith.mulf %9, %9 : vector<16x128xf32>
    %11 = vector.broadcast %cst : f32 to vector<16x128xf32>
    %12 = arith.addf %10, %11 : vector<16x128xf32>
    %13 = math.sqrt %12 : vector<16x128xf32>
    %c0_3 = arith.constant 0 : index
    %c0_4 = arith.constant 0 : index
    %14 = vector.load %arg4[%c0_3, %c0_4] : memref<8x128xf32, #tpu.memory_space<vmem>>, vector<8x128xf32>
    %15 = vector.shape_cast %13 : vector<16x128xf32> to vector<2x8x128xf32>
    %cst_5 = arith.constant dense<0.000000e+00> : vector<8x128xf32>
    %16 = vector.multi_reduction <add>, %15, %cst_5 [0] : vector<2x8x128xf32> to vector<8x128xf32>
    %17 = arith.addf %14, %16 : vector<8x128xf32>
    %c0_6 = arith.constant 0 : index
    %c0_7 = arith.constant 0 : index
    %18 = vector.load %arg4[%c0_6, %c0_7] : memref<8x128xf32, #tpu.memory_space<vmem>>, vector<8x128xf32>
    tpu.vector_store %arg4[%c0_6, %c0_7], %17 {strides = array<i32>} : memref<8x128xf32, #tpu.memory_space<vmem>>, vector<8x128xf32>,
    %c1_i32 = arith.constant 1 : i32
    return
  }
  func.func @transform_0(%arg0: i32, %arg1: i32) -> (i32, i32) {
    %c1_i32 = arith.constant 1 : i32
    %0 = arith.muli %arg0, %c1_i32 : i32
    %1 = arith.addi %0, %arg1 : i32
    %c0_i32 = arith.constant 0 : i32
    %c0_i32_0 = arith.constant 0 : i32
    return %1, %c0_i32 : i32, i32
  }
  func.func @transform_1(%arg0: i32, %arg1: i32) -> (i32, i32) {
    %c1_i32 = arith.constant 1 : i32
    %0 = arith.muli %arg0, %c1_i32 : i32
    %1 = arith.addi %0, %arg1 : i32
    %c0_i32 = arith.constant 0 : i32
    %c0_i32_0 = arith.constant 0 : i32
    return %1, %c0_i32 : i32, i32
  }
  func.func @transform_2(%arg0: i32, %arg1: i32) -> (i32, i32) {
    %c0_i32 = arith.constant 0 : i32
    %c0_i32_0 = arith.constant 0 : i32
    return %arg0, %c0_i32 : i32, i32
  }
}

</mosaic_0001>

<llo_original>
// kernel: tpu_custom_call.1
$region0: #{tpu_custom_call.1}
  #allocation0 [shape = 'u32[]', space=smem, size = 0x4, offset = 0x4, fixed_abs, tag = 'smem constant byte address 0x4 - core index']
  #allocation1 [shape = 'u32[144,128]{1,0:T(1,128)}', space=vmem, size = 0x12000, scoped, tag = 'internal scratch']
  %s0 = inlined_call_operand.hbm [shape: f32[16,128], index: 0, kind: input, shape index: {}]
  %s1 = inlined_call_operand.hbm [shape: f32[16,128], index: 1, kind: input, shape index: {}]
  %s2 = inlined_call_operand.hbm [shape: f32[8,128], index: 2, kind: output, shape index: {}]
  %s3 = sld [smem:[#allocation0]]
  $region30: #{tpu_custom_call.1} parent=0
    _
  %s5 = ssub.s32 1, %s3
  %s6 = scalar_select 0, %s5, %s3
  $region1: #{tpu_custom_call.1} parent=0
    #allocation2 [shape = 'u8[8192]{0}', space=vmem, size = 0x2000, scoped, tag = 'input window, operand 0, single buffered']
    #allocation3 [shape = 's32[1]{0}', space=sflag, size = 0x4, scoped, tag = 'scoped memory for tpu_custom_call.1']
    #allocation4 [shape = 's32[1]{0}', space=sflag, size = 0x4, scoped, tag = 'scoped memory for tpu_custom_call.1']
    #allocation5 [shape = 'u8[8192]{0}', space=vmem, size = 0x2000, scoped, tag = 'input window, operand 1, single buffered']
    #allocation6 [shape = 's32[1]{0}', space=sflag, size = 0x4, scoped, tag = 'scoped memory for tpu_custom_call.1']
    #allocation7 [shape = 'u8[4096]{0}', space=vmem, size = 0x1000, scoped, tag = 'output window, operand 0, single buffered']
    %7 = vsyncpa [#allocation3], 0
    %8 = vsyncpa [#allocation6], 0
    %9 = vsyncpa [#allocation4], 0
    // Predicated region
    $region2: #{tpu_custom_call.1} parent=1 // pred_check
      _
    $region3: #{tpu_custom_call.1} parent=1 // pred_check_branch
      %11 = sbr.rel (0) target = $region5
    $region4: #{tpu_custom_call.1} parent=1 // pred_region
      %s12 = sadd.s32 0, 0
      %s13 = smul.u32 2, %s12
      %s15 = ssub.s32 256, 256
      %16 = vsyncadd [#allocation3], %s15
      %s17 = smul.addr %s13, 128
      %s18 = scalar_lea.hbm %s0, %s17
      %s19 = sshll.u32 [#allocation2], 4
      %s20 = int_to_ptr.vmem [resolvable:$true] %s19
      %25 = dma.hbm_to_vmem [thread:$0]  %s18, 256, %s20, [#allocation3], 128, 128, 8
    $region5: #{tpu_custom_call.1} parent=1 // pred_fallthru
      _
    // Predicated region
    $region6: #{tpu_custom_call.1} parent=1 // pred_check
      _
    $region7: #{tpu_custom_call.1} parent=1 // pred_check_branch
      %27 = sbr.rel (0) target = $region9
    $region8: #{tpu_custom_call.1} parent=1 // pred_region
      %s28 = sadd.s32 0, 0
      %s29 = smul.u32 2, %s28
      %s31 = ssub.s32 256, 256
      %32 = vsyncadd [#allocation6], %s31
      %s33 = smul.addr %s29, 128
      %s34 = scalar_lea.hbm %s1, %s33
      %s35 = sshll.u32 [#allocation5], 4
      %s36 = int_to_ptr.vmem [resolvable:$true] %s35
      %41 = dma.hbm_to_vmem [thread:$0]  %s34, 256, %s36, [#allocation6], 128, 128, 8
    $region9: #{tpu_custom_call.1} parent=1 // pred_fallthru
      _
    // Predicated region
    $region10: #{tpu_custom_call.1} parent=1 // pred_check
      _
    $region11: #{tpu_custom_call.1} parent=1 // pred_check_branch
      %43 = sbr.rel (0) target = $region13
    $region12: #{tpu_custom_call.1} parent=1 // pred_region
      %44 = dma.done [#allocation3], 256
    $region13: #{tpu_custom_call.1} parent=1 // pred_fallthru
      _
    // Predicated region
    $region14: #{tpu_custom_call.1} parent=1 // pred_check
      _
    $region15: #{tpu_custom_call.1} parent=1 // pred_check_branch
      %46 = sbr.rel (0) target = $region17
    $region16: #{tpu_custom_call.1} parent=1 // pred_region
      %47 = dma.done [#allocation6], 256
    $region17: #{tpu_custom_call.1} parent=1 // pred_fallthru
      _
    %s48 = sadd.s32 0, 0
    %s49 = smul.u32 2, %s48
    %s50 = sadd.s32 0, 0
    %s51 = smul.u32 2, %s50
    %p52 = scmp.eq.s32.totalorder 0, 0
    // Predicated region
    $region18: #{tpu_custom_call.1} parent=1 // pred_check
      %p53 = pneg %p52
    $region19: #{tpu_custom_call.1} parent=1 // pred_check_branch
      %55 = sbr.rel (%p53) target = $region21
    $region20: #{tpu_custom_call.1} parent=1 // pred_region
      %56 = vst [vmem:[#allocation7] sm:$0xff] 0.0
    $region21: #{tpu_custom_call.1} parent=1 // pred_fallthru
      _
    %v57 = vld [vmem:[#allocation2] sm:$0xff]
    %v58 = vld [vmem:[#allocation2 + $0x8] sm:$0xff]
    %v59 = vld [vmem:[#allocation5] sm:$0xff]
    %v60 = vld [vmem:[#allocation5 + $0x8] sm:$0xff]
    %v61 = vsub.f32 %v57, %v59
    %v62 = vsub.f32 %v58, %v60
    %v63 = vmul.f32 %v61, %v61
    %v64 = vmul.f32 %v62, %v62
    %v65 = vadd.f32 %v63, 1e-06
    %v66 = vadd.f32 %v64, 1e-06
    %v67 = vrsqrt.pop %v65
    %v68 = vmul.f32 %v65, %v67
    %vm69 = vcmp.eq.f32.partialorder %v65, inf
    %v70 = vsel %vm69, %v65, %v68
    %vm71 = vcmp.eq.f32.partialorder %v65, 0.0
    %v72 = vand.u32 %v65, 2147483648
    %v73 = vsel %vm71, %v72, %v70
    %v74 = vrsqrt.pop %v66
    %v75 = vmul.f32 %v66, %v74
    %vm76 = vcmp.eq.f32.partialorder %v66, inf
    %v77 = vsel %vm76, %v66, %v75
    %vm78 = vcmp.eq.f32.partialorder %v66, 0.0
    %v79 = vand.u32 %v66, 2147483648
    %v80 = vsel %vm78, %v79, %v77
    %v81 = vld [vmem:[#allocation7] sm:$0xff]
    %v82 = vadd.f32 %v73, %v80
    %v83 = vadd.f32 %v81, %v82
    %84 = vst [vmem:[#allocation7] sm:$0xff] %v83
    // Predicated region
    $region22: #{tpu_custom_call.1} parent=1 // pred_check
      _
    $region23: #{tpu_custom_call.1} parent=1 // pred_check_branch
      %86 = sbr.rel (0) target = $region25
    $region24: #{tpu_custom_call.1} parent=1 // pred_region
      %s88 = ssub.s32 128, 128
      %89 = vsyncadd [#allocation4], %s88
      %s91 = sshll.u32 [#allocation7], 4
      %s92 = int_to_ptr.vmem [resolvable:$true] %s91
      %94 = dma.vmem_to_hbm [thread:$0]  %s92, 128, %s2, [#allocation4]
    $region25: #{tpu_custom_call.1} parent=1 // pred_fallthru
      _
    // Predicated region
    $region26: #{tpu_custom_call.1} parent=1 // pred_check
      _
    $region27: #{tpu_custom_call.1} parent=1 // pred_check_branch
      %96 = sbr.rel (0) target = $region29
    $region28: #{tpu_custom_call.1} parent=1 // pred_region
      %97 = dma.done [#allocation4], 128
    $region29: #{tpu_custom_call.1} parent=1 // pred_fallthru
      _
    %98 = vsyncpa [#allocation3], 1
    %99 = vsyncpa [#allocation6], 1
    %100 = vsyncpa [#allocation4], 1

</llo_original>
